<compile_context>
chip_gen: v5e
topology: v5e:2x2
jax: 0.10.0
libtpu: 0.0.40
codegen_flags: <defaults>
</compile_context>

<pallas_src>
import functools

import jax
import jax.numpy as jnp
from jax.experimental import pallas as pl
from jax.experimental.pallas import tpu as pltpu


PARAMS = dict(
    DICT_SIZE=50,
    EMBED_DIM=32,      # Conv1d "length"
    TOKEN_SIZE=8,      # Conv1d in_channels (token ids per sample)
    N_FILTER=4,
    FILTER_SIZE=3,
    STRIDE=1,
    PADDING=1,
    POOL_SIZE=2,
    N_HIDDEN_NODE=16,
)

PACK_W = 128                     # lane width of the packed output rows
GRP = 32                         # lanes per sample inside a packed row
SAMPLES_PER_ROW = PACK_W // GRP  # 4 batch rows per 128-lane output row
MAX_BATCH_TILE = 1024


def _round_up(x, m):
    return (x + m - 1) // m * m


def _cnn_kernel(ids_ref, wcomb_ref, fw_ref, aux_ref, out_ref,
                *, dict_size, n_tok, n_conv, l_pool, nf, pool, h):
    bt = ids_ref.shape[0]
    cdt = wcomb_ref.dtype

    # ---- embedding gather as a one-hot: hit[b, c*DICT + d] = (ids[b, c] == d) ----
    k_in = wcomb_ref.shape[0]                                    # C * DICT
    k_iota = jax.lax.broadcasted_iota(jnp.int32, (bt, k_in), 1)
    hit = k_iota == ids_ref[:, 0:1]
    for c in range(1, n_tok):
        hit = jnp.logical_or(hit, k_iota == (ids_ref[:, c:c + 1] + c * dict_size))
    onehot = hit.astype(cdt)                                     # exact 0/1 in any dtype

    # ---- embedding + Conv1d fused into ONE MXU matmul (K = C*DICT, N = l_out*NF) ----
    conv = jnp.dot(onehot, wcomb_ref[...], preferred_element_type=jnp.float32)
    conv = jnp.maximum(conv + aux_ref[0:1, 0:n_conv], 0.0)       # bias + ReLU (f32)

    # ---- MaxPool1d: columns ordered (pool_phase, l_pool, NF) -> max of the halves ----
    half = l_pool * nf
    pooled = conv[:, 0:half]
    for p in range(1, pool):
        pooled = jnp.maximum(pooled, conv[:, p * half:(p + 1) * half])

    # ---- fc and out fused: cols 0..H-1 are the features, col H is the logit ----
    fl = jnp.dot(pooled.astype(fw_ref.dtype), fw_ref[...],
                 preferred_element_type=jnp.float32)
    fl = fl + aux_ref[1:2, 0:h + 1]
    lane = jax.lax.broadcasted_iota(jnp.int32, fl.shape, 1)
    packed = jnp.where(lane == h, 1.0 / (1.0 + jnp.exp(-fl)), fl)   # exact sigmoid on col H

    # ---- lane-dense packed store: 4 batch rows per 128-lane output row ----
    out_ref[...] = jnp.zeros(out_ref.shape, jnp.float32)
    q = bt // SAMPLES_PER_ROW
    for i in range(SAMPLES_PER_ROW):
        out_ref[:, GRP * i:GRP * i + h + 1] = packed[i * q:(i + 1) * q, :]


def cnn_forward(x_ids, weights, params, compute_dtype=jnp.bfloat16):
    """x_ids: int (B, TOKEN_SIZE). Returns (y_score, y_pred, features).

    compute_dtype applies to the matmul operands only (MXU bf16-native on all gens);
    accumulation and all elementwise math are f32.
    """
    p = params
    B = x_ids.shape[0]
    DICT, E, C = p['DICT_SIZE'], p['EMBED_DIM'], p['TOKEN_SIZE']
    NF, FS, ST = p['N_FILTER'], p['FILTER_SIZE'], p['STRIDE']
    PD, PO, H = p['PADDING'], p['POOL_SIZE'], p['N_HIDDEN_NODE']
    l_out = (E - FS + 2 * PD) // ST + 1
    l_pool = l_out // PO
    n_conv = PO * l_pool * NF
    assert H + 1 <= GRP

    # ---- fold embedding + conv taps into one combined weight (pure weight algebra;
    #      TODO(synk): hoist this one-time folding out of the per-call jit for serving) ----
    emb_pad = jnp.pad(weights['emb'], ((0, 0), (PD, PD)))            # (DICT, E + 2*PD)
    taps = jnp.stack([emb_pad[:, k:k + ST * (l_out - 1) + 1:ST] for k in range(FS)],
                     axis=-1)                                        # (DICT, l_out, FS)
    wc = jnp.einsum('dlk,fck->cdlf', taps, weights['conv_w'])        # (C, DICT, l_out, NF)
    wc = wc[:, :, :l_pool * PO, :]                                   # MaxPool1d drops remainder
    wc = wc.reshape(C, DICT, l_pool, PO, NF).transpose(0, 1, 3, 2, 4)
    wcomb = wc.reshape(C * DICT, n_conv).astype(compute_dtype)

    # ---- fc fused with out; rows permuted to the pooled (l_pool, NF) lane order ----
    fc_w, fc_b = weights['fc_w'], weights['fc_b']
    out_w, out_b = weights['out_w'], weights['out_b']
    fc_ext = jnp.concatenate([fc_w, out_w @ fc_w], axis=0)           # (H+1, NF*l_pool)
    fw = fc_ext.T.reshape(NF, l_pool, H + 1).transpose(1, 0, 2).reshape(l_pool * NF, H + 1)
    fw = fw.astype(compute_dtype)

    # ---- tiny params packed lane-dense (always f32) ----
    aux_w = max(PACK_W, n_conv)
    aux = jnp.zeros((2, aux_w), jnp.float32)
    aux = aux.at[0, :n_conv].set(jnp.tile(weights['conv_b'], PO * l_pool))
    aux = aux.at[1, :H].set(fc_b)
    aux = aux.at[1, H].set(out_w[0] @ fc_b + out_b[0])

    # ---- batch tiling: bt <= ceil(B/2) so a v7x chip's two TCs both get grid steps ----
    bt = min(MAX_BATCH_TILE, max(32, _round_up(pl.cdiv(B, 2), 32)))
    b_pad = _round_up(B, bt)
    ids = x_ids.astype(jnp.int32)
    if b_pad != B:
        ids = jnp.pad(ids, ((0, b_pad - B), (0, 0)))   # padded rows use token 0, discarded

    grid = (b_pad // bt,)
    kernel = functools.partial(_cnn_kernel, dict_size=DICT, n_tok=C, n_conv=n_conv,
                               l_pool=l_pool, nf=NF, pool=PO, h=H)

    packed = pl.pallas_call(
        kernel,
        out_shape=jax.ShapeDtypeStruct((b_pad // SAMPLES_PER_ROW, PACK_W), jnp.float32),
        grid=grid,
        in_specs=[
            pl.BlockSpec((bt, C), lambda b: (b, 0)),                     # ids (int32)
            pl.BlockSpec((C * DICT, n_conv), lambda b: (0, 0)),          # emb (x) conv weight
            pl.BlockSpec((l_pool * NF, H + 1), lambda b: (0, 0)),        # fused fc|out weight
            pl.BlockSpec((2, aux_w), lambda b: (0, 0)),                  # biases
        ],
        out_specs=pl.BlockSpec((bt // SAMPLES_PER_ROW, PACK_W), lambda b: (b, 0)),
        compiler_params=pltpu.CompilerParams(
            dimension_semantics=("parallel",),
        ),
    )(ids, wcomb, fw, aux)

    # ---- unpack: out row g*q + r, lane group i  ->  sample g*bt + i*q + r ----
    q = bt // SAMPLES_PER_ROW
    g = b_pad // bt
    slab = packed.reshape(g, q, SAMPLES_PER_ROW, GRP).transpose(0, 2, 1, 3).reshape(b_pad, GRP)
    slab = slab[:B]
    features = slab[:, :H]
    y_score = slab[:, H:H + 1]
    y_pred = jnp.round(y_score)          # torch.round (half-to-even), done in the wrapper
    return y_score, y_pred, features


def _reference(x_ids, weights, params):
    """Pure-JAX reference mirroring the PyTorch forward exactly (f32)."""
    p = params
    E, FS, ST, PD, PO = (p['EMBED_DIM'], p['FILTER_SIZE'], p['STRIDE'],
                         p['PADDING'], p['POOL_SIZE'])
    l_out = (E - FS + 2 * PD) // ST + 1
    l_pool = l_out // PO

    emb = weights['emb'][x_ids]                                   # (B, C, E)
    x = jnp.pad(emb, ((0, 0), (0, 0), (PD, PD)))
    B, C, _ = x.shape
    NF = p['N_FILTER']
    conv = jnp.zeros((B, NF, l_out), jnp.float32)
    for k in range(FS):
        xs = x[:, :, k:k + ST * (l_out - 1) + 1:ST]               # (B, C, L)
        conv = conv + jnp.einsum('bcl,fc->bfl', xs, weights['conv_w'][:, :, k])
    conv = jax.nn.relu(conv + weights['conv_b'][None, :, None])
    pooled = conv[:, :, :l_pool * PO].reshape(B, NF, l_pool, PO).max(axis=-1)
    flat = pooled.reshape(B, -1)
    features = flat @ weights['fc_w'].T + weights['fc_b']
    logits = features @ weights['out_w'].T + weights['out_b']
    score = jax.nn.sigmoid(logits)
    return score, jnp.round(score), features


def init_weights(key, params):
    p = params
    E, C, NF, FS, H = (p['EMBED_DIM'], p['TOKEN_SIZE'], p['N_FILTER'],
                       p['FILTER_SIZE'], p['N_HIDDEN_NODE'])
    l_out = (E - FS + 2 * p['PADDING']) // p['STRIDE'] + 1
    flat_dim = NF * (l_out // p['POOL_SIZE'])
    ks = jax.random.split(key, 7)
    u = lambda k, shape, b: jax.random.uniform(k, shape, jnp.float32, -b, b)
    return {
        'emb':    jax.random.normal(ks[0], (p['DICT_SIZE'], E), jnp.float32),
        'conv_w': u(ks[1], (NF, C, FS), 1.0 / (C * FS) ** 0.5),
        'conv_b': u(ks[2], (NF,), 1.0 / (C * FS) ** 0.5),
        'fc_w':   u(ks[3], (H, flat_dim), 1.0 / flat_dim ** 0.5),
        'fc_b':   u(ks[4], (H,), 1.0 / flat_dim ** 0.5),
        'out_w':  u(ks[5], (1, H), 1.0 / H ** 0.5),
        'out_b':  u(ks[6], (1,), 1.0 / H ** 0.5),
    }


if __name__ == "__main__":
    key = jax.random.PRNGKey(0)
    wkey, xkey = jax.random.split(key)
    weights = init_weights(wkey, PARAMS)

    B = 2
    x_ids = jax.random.randint(xkey, (B, PARAMS['TOKEN_SIZE']), 0,
                               PARAMS['DICT_SIZE'], dtype=jnp.int32)

    rs, rp, rf = _reference(x_ids, weights, PARAMS)

    # f32 matmul operands: tight check (exact sigmoid, exact one-hot select)
    fwd32 = jax.jit(functools.partial(cnn_forward, params=PARAMS,
                                      compute_dtype=jnp.float32))
    s32, p32, f32o = jax.block_until_ready(fwd32(x_ids, weights))
    assert jnp.allclose(s32, rs, atol=1e-3), "y_score mismatch (f32)"
    assert jnp.allclose(f32o, rf, atol=1e-3), "features mismatch (f32)"
    assert bool(jnp.all((p32 == rp) | (jnp.abs(rs - 0.5) < 1e-3))), "y_pred mismatch (f32)"

    # default bf16 matmul operands (f32 accumulation): dtype-aware tolerance
    fwd_bf16 = jax.jit(functools.partial(cnn_forward, params=PARAMS))
    sbf, pbf, fbf = jax.block_until_ready(fwd_bf16(x_ids, weights))
    assert jnp.allclose(sbf, rs, atol=2e-2), "y_score mismatch (bf16)"
    assert jnp.allclose(fbf, rf, atol=8e-2), "features mismatch (bf16)"

    print("KERNEL_OK")
</pallas_src>

<mosaic_0001>
module attributes {stable_mosaic.version = 11 : i64} {
  func.func @_cnn_kernel(%arg0: i32, %arg1: memref<32x8xi32, #tpu.memory_space<vmem>>, %arg2: memref<400x128xf32, #tpu.memory_space<vmem>>, %arg3: memref<64x17xf32, #tpu.memory_space<vmem>>, %arg4: memref<2x128xf32, #tpu.memory_space<vmem>>, %arg5: memref<8x128xf32, #tpu.memory_space<vmem>>) attributes {dimension_semantics = [#tpu.dimension_semantics<parallel>], iteration_bounds = array<i64: 1>, scalar_prefetch = 0 : i64, scratch_operands = 0 : i64, tpu.core_type = #tpu.core_type<tc>, window_params = [{transform_indices = @transform_0, window_bounds = array<i64: 32, 8>}, {pipeline_mode = #tpu.pipeline_mode<synchronous>, transform_indices = @transform_1, window_bounds = array<i64: 400, 128>}, {pipeline_mode = #tpu.pipeline_mode<synchronous>, transform_indices = @transform_2, window_bounds = array<i64: 64, 17>}, {pipeline_mode = #tpu.pipeline_mode<synchronous>, transform_indices = @transform_3, window_bounds = array<i64: 2, 128>}, {transform_indices = @transform_4, window_bounds = array<i64: 8, 128>}]} {
    %0 = tpu.iota {dimensions = array<i32: 1>} : vector<32x400xi32>
    %c0 = arith.constant 0 : index
    %c0_0 = arith.constant 0 : index
    %1 = vector.load %arg1[%c0, %c0_0] : memref<32x8xi32, #tpu.memory_space<vmem>>, vector<32x1xi32>
    %2 = vector.broadcast %1 : vector<32x1xi32> to vector<32x400xi32>
    %3 = arith.cmpi eq, %0, %2 : vector<32x400xi32>
    %c0_1 = arith.constant 0 : index
    %c1 = arith.constant 1 : index
    %4 = vector.load %arg1[%c0_1, %c1] : memref<32x8xi32, #tpu.memory_space<vmem>>, vector<32x1xi32>
    %c50_i32 = arith.constant 50 : i32
    %5 = vector.broadcast %c50_i32 : i32 to vector<32x1xi32>
    %6 = arith.addi %4, %5 : vector<32x1xi32>
    %7 = vector.broadcast %6 : vector<32x1xi32> to vector<32x400xi32>
    %8 = arith.cmpi eq, %0, %7 : vector<32x400xi32>
    %9 = arith.ori %3, %8 : vector<32x400xi1>
    %c0_2 = arith.constant 0 : index
    %c2 = arith.constant 2 : index
    %10 = vector.load %arg1[%c0_2, %c2] : memref<32x8xi32, #tpu.memory_space<vmem>>, vector<32x1xi32>
    %c100_i32 = arith.constant 100 : i32
    %11 = vector.broadcast %c100_i32 : i32 to vector<32x1xi32>
    %12 = arith.addi %10, %11 : vector<32x1xi32>
    %13 = vector.broadcast %12 : vector<32x1xi32> to vector<32x400xi32>
    %14 = arith.cmpi eq, %0, %13 : vector<32x400xi32>
    %15 = arith.ori %9, %14 : vector<32x400xi1>
    %c0_3 = arith.constant 0 : index
    %c3 = arith.constant 3 : index
    %16 = vector.load %arg1[%c0_3, %c3] : memref<32x8xi32, #tpu.memory_space<vmem>>, vector<32x1xi32>
    %c150_i32 = arith.constant 150 : i32
    %17 = vector.broadcast %c150_i32 : i32 to vector<32x1xi32>
    %18 = arith.addi %16, %17 : vector<32x1xi32>
    %19 = vector.broadcast %18 : vector<32x1xi32> to vector<32x400xi32>
    %20 = arith.cmpi eq, %0, %19 : vector<32x400xi32>
    %21 = arith.ori %15, %20 : vector<32x400xi1>
    %c0_4 = arith.constant 0 : index
    %c4 = arith.constant 4 : index
    %22 = vector.load %arg1[%c0_4, %c4] : memref<32x8xi32, #tpu.memory_space<vmem>>, vector<32x1xi32>
    %c200_i32 = arith.constant 200 : i32
    %23 = vector.broadcast %c200_i32 : i32 to vector<32x1xi32>
    %24 = arith.addi %22, %23 : vector<32x1xi32>
    %25 = vector.broadcast %24 : vector<32x1xi32> to vector<32x400xi32>
    %26 = arith.cmpi eq, %0, %25 : vector<32x400xi32>
    %27 = arith.ori %21, %26 : vector<32x400xi1>
    %c0_5 = arith.constant 0 : index
    %c5 = arith.constant 5 : index
    %28 = vector.load %arg1[%c0_5, %c5] : memref<32x8xi32, #tpu.memory_space<vmem>>, vector<32x1xi32>
    %c250_i32 = arith.constant 250 : i32
    %29 = vector.broadcast %c250_i32 : i32 to vector<32x1xi32>
    %30 = arith.addi %28, %29 : vector<32x1xi32>
    %31 = vector.broadcast %30 : vector<32x1xi32> to vector<32x400xi32>
    %32 = arith.cmpi eq, %0, %31 : vector<32x400xi32>
    %33 = arith.ori %27, %32 : vector<32x400xi1>
    %c0_6 = arith.constant 0 : index
    %c6 = arith.constant 6 : index
    %34 = vector.load %arg1[%c0_6, %c6] : memref<32x8xi32, #tpu.memory_space<vmem>>, vector<32x1xi32>
    %c300_i32 = arith.constant 300 : i32
    %35 = vector.broadcast %c300_i32 : i32 to vector<32x1xi32>
    %36 = arith.addi %34, %35 : vector<32x1xi32>
    %37 = vector.broadcast %36 : vector<32x1xi32> to vector<32x400xi32>
    %38 = arith.cmpi eq, %0, %37 : vector<32x400xi32>
    %39 = arith.ori %33, %38 : vector<32x400xi1>
    %c0_7 = arith.constant 0 : index
    %c7 = arith.constant 7 : index
    %40 = vector.load %arg1[%c0_7, %c7] : memref<32x8xi32, #tpu.memory_space<vmem>>, vector<32x1xi32>
    %c350_i32 = arith.constant 350 : i32
    %41 = vector.broadcast %c350_i32 : i32 to vector<32x1xi32>
    %42 = arith.addi %40, %41 : vector<32x1xi32>
    %43 = vector.broadcast %42 : vector<32x1xi32> to vector<32x400xi32>
    %44 = arith.cmpi eq, %0, %43 : vector<32x400xi32>
    %45 = arith.ori %39, %44 : vector<32x400xi1>
    %46 = arith.extui %45 : vector<32x400xi1> to vector<32x400xi32>
    %47 = arith.sitofp %46 : vector<32x400xi32> to vector<32x400xf32>
    %c0_8 = arith.constant 0 : index
    %c0_9 = arith.constant 0 : index
    %48 = vector.load %arg2[%c0_8, %c0_9] : memref<400x128xf32, #tpu.memory_space<vmem>>, vector<400x128xf32>
    %cst = arith.constant dense<0.000000e+00> : vector<32x128xf32>
    %49 = tpu.matmul %47, %48, %cst {dimension_numbers = #tpu.dot_dimension_numbers<[1], [0], [0], [1], [0, 0, 1, 1], [], []>} : vector<32x400xf32>, vector<400x128xf32>, vector<32x128xf32> -> vector<32x128xf32>
    %c0_10 = arith.constant 0 : index
    %c0_11 = arith.constant 0 : index
    %50 = vector.load %arg4[%c0_10, %c0_11] : memref<2x128xf32, #tpu.memory_space<vmem>>, vector<1x128xf32>
    %51 = vector.broadcast %50 : vector<1x128xf32> to vector<32x128xf32>
    %52 = arith.addf %49, %51 : vector<32x128xf32>
    %cst_12 = arith.constant 0.000000e+00 : f32
    %53 = vector.broadcast %cst_12 : f32 to vector<32x128xf32>
    %54 = arith.maximumf %52, %53 : vector<32x128xf32>
    %55 = vector.extract_strided_slice %54 {offsets = [0, 0], sizes = [32, 64], strides = [1, 1]} : vector<32x128xf32> to vector<32x64xf32>
    %56 = vector.extract_strided_slice %54 {offsets = [0, 64], sizes = [32, 64], strides = [1, 1]} : vector<32x128xf32> to vector<32x64xf32>
    %57 = arith.maximumf %55, %56 : vector<32x64xf32>
    %c0_13 = arith.constant 0 : index
    %c0_14 = arith.constant 0 : index
    %58 = vector.load %arg3[%c0_13, %c0_14] : memref<64x17xf32, #tpu.memory_space<vmem>>, vector<64x17xf32>
    %cst_15 = arith.constant dense<0.000000e+00> : vector<32x17xf32>
    %59 = tpu.matmul %57, %58, %cst_15 {dimension_numbers = #tpu.dot_dimension_numbers<[1], [0], [0], [1], [0, 0, 1, 1], [], []>} : vector<32x64xf32>, vector<64x17xf32>, vector<32x17xf32> -> vector<32x17xf32>
    %c1_16 = arith.constant 1 : index
    %c0_17 = arith.constant 0 : index
    %60 = vector.load %arg4[%c1_16, %c0_17] : memref<2x128xf32, #tpu.memory_space<vmem>>, vector<1x17xf32>
    %61 = vector.broadcast %60 : vector<1x17xf32> to vector<32x17xf32>
    %62 = arith.addf %59, %61 : vector<32x17xf32>
    %63 = tpu.iota {dimensions = array<i32: 1>} : vector<32x17xi32>
    %c16_i32 = arith.constant 16 : i32
    %64 = vector.broadcast %c16_i32 : i32 to vector<32x17xi32>
    %65 = arith.cmpi eq, %63, %64 : vector<32x17xi32>
    %cst_18 = arith.constant 0.000000e+00 : f32
    %66 = vector.broadcast %cst_18 : f32 to vector<32x17xf32>
    %67 = arith.subf %66, %62 : vector<32x17xf32>
    %68 = math.exp %67 : vector<32x17xf32>
    %cst_19 = arith.constant 1.000000e+00 : f32
    %69 = vector.broadcast %cst_19 : f32 to vector<32x17xf32>
    %70 = arith.addf %69, %68 : vector<32x17xf32>
    %cst_20 = arith.constant 1.000000e+00 : f32
    %71 = vector.broadcast %cst_20 : f32 to vector<32x17xf32>
    %72 = arith.divf %71, %70 : vector<32x17xf32>
    %73 = arith.select %65, %72, %62 : vector<32x17xi1>, vector<32x17xf32>
    %cst_21 = arith.constant 0.000000e+00 : f32
    %74 = vector.broadcast %cst_21 : f32 to vector<8x128xf32>
    %c0_22 = arith.constant 0 : index
    %c0_23 = arith.constant 0 : index
    %75 = vector.load %arg5[%c0_22, %c0_23] : memref<8x128xf32, #tpu.memory_space<vmem>>, vector<8x128xf32>
    tpu.vector_store %arg5[%c0_22, %c0_23], %74 {strides = array<i32>} : memref<8x128xf32, #tpu.memory_space<vmem>>, vector<8x128xf32>,
    %76 = vector.extract_strided_slice %73 {offsets = [0, 0], sizes = [8, 17], strides = [1, 1]} : vector<32x17xf32> to vector<8x17xf32>
    %c0_24 = arith.constant 0 : index
    %c0_25 = arith.constant 0 : index
    %77 = vector.load %arg5[%c0_24, %c0_25] : memref<8x128xf32, #tpu.memory_space<vmem>>, vector<8x17xf32>
    tpu.vector_store %arg5[%c0_24, %c0_25], %76 {strides = array<i32>} : memref<8x128xf32, #tpu.memory_space<vmem>>, vector<8x17xf32>,
    %78 = vector.extract_strided_slice %73 {offsets = [8, 0], sizes = [8, 17], strides = [1, 1]} : vector<32x17xf32> to vector<8x17xf32>
    %c0_26 = arith.constant 0 : index
    %c32 = arith.constant 32 : index
    %79 = vector.load %arg5[%c0_26, %c32] : memref<8x128xf32, #tpu.memory_space<vmem>>, vector<8x17xf32>
    tpu.vector_store %arg5[%c0_26, %c32], %78 {strides = array<i32>} : memref<8x128xf32, #tpu.memory_space<vmem>>, vector<8x17xf32>,
    %80 = vector.extract_strided_slice %73 {offsets = [16, 0], sizes = [8, 17], strides = [1, 1]} : vector<32x17xf32> to vector<8x17xf32>
    %c0_27 = arith.constant 0 : index
    %c64 = arith.constant 64 : index
    %81 = vector.load %arg5[%c0_27, %c64] : memref<8x128xf32, #tpu.memory_space<vmem>>, vector<8x17xf32>
    tpu.vector_store %arg5[%c0_27, %c64], %80 {strides = array<i32>} : memref<8x128xf32, #tpu.memory_space<vmem>>, vector<8x17xf32>,
    %82 = vector.extract_strided_slice %73 {offsets = [24, 0], sizes = [8, 17], strides = [1, 1]} : vector<32x17xf32> to vector<8x17xf32>
    %c0_28 = arith.constant 0 : index
    %c96 = arith.constant 96 : index
    %83 = vector.load %arg5[%c0_28, %c96] : memref<8x128xf32, #tpu.memory_space<vmem>>, vector<8x17xf32>
    tpu.vector_store %arg5[%c0_28, %c96], %82 {strides = array<i32>} : memref<8x128xf32, #tpu.memory_space<vmem>>, vector<8x17xf32>,
    return
  }
  func.func @transform_0(%arg0: i32) -> (i32, i32) {
    %c0_i32 = arith.constant 0 : i32
    %c0_i32_0 = arith.constant 0 : i32
    return %arg0, %c0_i32 : i32, i32
  }
  func.func @transform_1(%arg0: i32) -> (i32, i32) {
    %c0_i32 = arith.constant 0 : i32
    %c0_i32_0 = arith.constant 0 : i32
    %c0_i32_1 = arith.constant 0 : i32
    return %c0_i32, %c0_i32_0 : i32, i32
  }
  func.func @transform_2(%arg0: i32) -> (i32, i32) {
    %c0_i32 = arith.constant 0 : i32
    %c0_i32_0 = arith.constant 0 : i32
    %c0_i32_1 = arith.constant 0 : i32
    return %c0_i32, %c0_i32_0 : i32, i32
  }
  func.func @transform_3(%arg0: i32) -> (i32, i32) {
    %c0_i32 = arith.constant 0 : i32
    %c0_i32_0 = arith.constant 0 : i32
    %c0_i32_1 = arith.constant 0 : i32
    return %c0_i32, %c0_i32_0 : i32, i32
  }
  func.func @transform_4(%arg0: i32) -> (i32, i32) {
    %c0_i32 = arith.constant 0 : i32
    %c0_i32_0 = arith.constant 0 : i32
    return %arg0, %c0_i32 : i32, i32
  }
}

</mosaic_0001>

<llo_original>
// kernel: tile.8
$region0: #{tile.8}
  #allocation0 [shape = 's32[1]{0}', space=sflag, size = 0x4, scoped, tag = 'scoped memory for tile.8']
  %s0 = inlined_call_operand.vmem [shape: f32[4], index: 0, kind: input, shape index: {}]
  %s1 = inlined_call_operand.vmem [shape: f32[32,4], index: 1, kind: output, shape index: {}]
  // Predicated region
  $region2: #{tile.8} parent=0 // pred_check
    _
  $region3: #{tile.8} parent=0 // pred_check_branch
    %3 = sbr.rel (0) target = $region5
  $region4: #{tile.8} parent=0 // pred_region
    _
  $region5: #{tile.8} parent=0 // pred_fallthru
    _
  %v4 = vld [vmem:[%s0] ss:$0 sm:$0xff]
  %5 = vst [vmem:[%s1] sm:$0xff] %v4
  %s6 = scalar_lea.vmem %s1, 8
  %7 = vst [vmem:[%s6] sm:$0xff] %v4
  %s8 = scalar_lea.vmem %s1, 16
  %9 = vst [vmem:[%s8] sm:$0xff] %v4
  %s10 = scalar_lea.vmem %s1, 24
  %11 = vst [vmem:[%s10] sm:$0xff] %v4

// kernel: cnn_forward.1
$region0: #{cnn_forward.1}
  #allocation0 [shape = 'u32[]', space=smem, size = 0x4, offset = 0x4, fixed_abs, tag = 'smem constant byte address 0x4 - core index']
  #allocation1 [shape = 'u32[72,128]{1,0:T(1,128)}', space=vmem, size = 0x9000, scoped, tag = 'internal scratch']
  %s0 = inlined_call_operand.vmem [shape: s32[32,8], index: 0, kind: input, shape index: {}]
  %s1 = inlined_call_operand.vmem [shape: f32[400,128], index: 1, kind: input, shape index: {}]
  %s2 = inlined_call_operand.vmem [shape: f32[64,17], index: 2, kind: input, shape index: {}]
  %s3 = inlined_call_operand.vmem [shape: f32[2,128], index: 3, kind: input, shape index: {}]
  %s4 = inlined_call_operand.vmem [shape: f32[8,128], index: 4, kind: output, shape index: {}]
  %s5 = sld [smem:[#allocation0]]
  $region26: #{cnn_forward.1} parent=0
    _
  %s7 = ssub.s32 1, %s5
  %s8 = scalar_select 0, %s7, %s5
  // Predicated region
  $region2: #{cnn_forward.1} parent=0 // pred_check
    _
  $region3: #{cnn_forward.1} parent=0 // pred_check_branch
    %10 = sbr.rel (0) target = $region5
  $region4: #{cnn_forward.1} parent=0 // pred_region
    _
  $region5: #{cnn_forward.1} parent=0 // pred_fallthru
    _
  // Predicated region
  $region6: #{cnn_forward.1} parent=0 // pred_check
    _
  $region7: #{cnn_forward.1} parent=0 // pred_check_branch
    %12 = sbr.rel (0) target = $region9
  $region8: #{cnn_forward.1} parent=0 // pred_region
    _
  $region9: #{cnn_forward.1} parent=0 // pred_fallthru
    _
  // Predicated region
  $region10: #{cnn_forward.1} parent=0 // pred_check
    _
  $region11: #{cnn_forward.1} parent=0 // pred_check_branch
    %14 = sbr.rel (0) target = $region13
  $region12: #{cnn_forward.1} parent=0 // pred_region
    _
  $region13: #{cnn_forward.1} parent=0 // pred_fallthru
    _
  // Predicated region
  $region14: #{cnn_forward.1} parent=0 // pred_check
    _
  $region15: #{cnn_forward.1} parent=0 // pred_check_branch
    %16 = sbr.rel (0) target = $region17
  $region16: #{cnn_forward.1} parent=0 // pred_region
    _
  $region17: #{cnn_forward.1} parent=0 // pred_fallthru
    _
  %v17 = vlaneseq
  %v18 = vand.u32 %v17, 127
  %v19 = vadd.s32 %v18, 128
  %v20 = vadd.s32 %v18, 256
  %v21 = vadd.s32 %v18, 384
  %v22 = vld [vmem:[%s0] sm:$0xff]
  %v23 = vld [vmem:[%s0 + $0x8] sm:$0xff]
  %v24 = vld [vmem:[%s0 + $0x10] sm:$0xff]
  %v25 = vld [vmem:[%s0 + $0x18] sm:$0xff]
  %26 = vset.pattern.permute.xlu0 0
  %27 = vperm.xlu0 %26, %v22
  %v28 = vpop.permute.xlu0 %27
  %29 = vset.pattern.permute.xlu0 0
  %30 = vperm.xlu0 %29, %v23
  %v31 = vpop.permute.xlu0 %30
  %32 = vset.pattern.permute.xlu0 0
  %33 = vperm.xlu0 %32, %v24
  %v34 = vpop.permute.xlu0 %33
  %35 = vset.pattern.permute.xlu0 0
  %36 = vperm.xlu0 %35, %v25
  %v37 = vpop.permute.xlu0 %36
  %vm38 = vcmp.eq.s32.totalorder %v18, %v28
  %vm39 = vcmp.eq.s32.totalorder %v19, %v28
  %vm40 = vcmp.eq.s32.totalorder %v20, %v28
  %vm41 = vcmp.eq.s32.totalorder %v21, %v28
  %vm42 = vcmp.eq.s32.totalorder %v18, %v31
  %vm43 = vcmp.eq.s32.totalorder %v19, %v31
  %vm44 = vcmp.eq.s32.totalorder %v20, %v31
  %vm45 = vcmp.eq.s32.totalorder %v21, %v31
  %vm46 = vcmp.eq.s32.totalorder %v18, %v34
  %vm47 = vcmp.eq.s32.totalorder %v19, %v34
  %vm48 = vcmp.eq.s32.totalorder %v20, %v34
  %vm49 = vcmp.eq.s32.totalorder %v21, %v34
  %vm50 = vcmp.eq.s32.totalorder %v18, %v37
  %vm51 = vcmp.eq.s32.totalorder %v19, %v37
  %vm52 = vcmp.eq.s32.totalorder %v20, %v37
  %vm53 = vcmp.eq.s32.totalorder %v21, %v37
  %v54 = vadd.s32 %v22, 50
  %v55 = vadd.s32 %v23, 50
  %v56 = vadd.s32 %v24, 50
  %v57 = vadd.s32 %v25, 50
  %58 = vset.pattern.permute.xlu0 1
  %59 = vperm.xlu0 %58, %v54
  %v60 = vpop.permute.xlu0 %59
  %61 = vset.pattern.permute.xlu0 1
  %62 = vperm.xlu0 %61, %v55
  %v63 = vpop.permute.xlu0 %62
  %64 = vset.pattern.permute.xlu0 1
  %65 = vperm.xlu0 %64, %v56
  %v66 = vpop.permute.xlu0 %65
  %67 = vset.pattern.permute.xlu0 1
  %68 = vperm.xlu0 %67, %v57
  %v69 = vpop.permute.xlu0 %68
  %vm70 = vcmp.eq.s32.totalorder %v18, %v60
  %vm71 = vcmp.eq.s32.totalorder %v19, %v60
  %vm72 = vcmp.eq.s32.totalorder %v20, %v60
  %vm73 = vcmp.eq.s32.totalorder %v21, %v60
  %vm74 = vcmp.eq.s32.totalorder %v18, %v63
  %vm75 = vcmp.eq.s32.totalorder %v19, %v63
  %vm76 = vcmp.eq.s32.totalorder %v20, %v63
  %vm77 = vcmp.eq.s32.totalorder %v21, %v63
  %vm78 = vcmp.eq.s32.totalorder %v18, %v66
  %vm79 = vcmp.eq.s32.totalorder %v19, %v66
  %vm80 = vcmp.eq.s32.totalorder %v20, %v66
  %vm81 = vcmp.eq.s32.totalorder %v21, %v66
  %vm82 = vcmp.eq.s32.totalorder %v18, %v69
  %vm83 = vcmp.eq.s32.totalorder %v19, %v69
  %vm84 = vcmp.eq.s32.totalorder %v20, %v69
  %vm85 = vcmp.eq.s32.totalorder %v21, %v69
  %vm86 = vmor %vm38, %vm70
  %vm87 = vmor %vm39, %vm71
  %vm88 = vmor %vm40, %vm72
  %vm89 = vmor %vm41, %vm73
  %vm90 = vmor %vm42, %vm74
  %vm91 = vmor %vm43, %vm75
  %vm92 = vmor %vm44, %vm76
  %vm93 = vmor %vm45, %vm77
  %vm94 = vmor %vm46, %vm78
  %vm95 = vmor %vm47, %vm79
  %vm96 = vmor %vm48, %vm80
  %vm97 = vmor %vm49, %vm81
  %vm98 = vmor %vm50, %vm82
  %vm99 = vmor %vm51, %vm83
  %vm100 = vmor %vm52, %vm84
  %vm101 = vmor %vm53, %vm85
  %v102 = vadd.s32 %v22, 100
  %v103 = vadd.s32 %v23, 100
  %v104 = vadd.s32 %v24, 100
  %v105 = vadd.s32 %v25, 100
  %106 = vset.pattern.permute.xlu0 2
  %107 = vperm.xlu0 %106, %v102
  %v108 = vpop.permute.xlu0 %107
  %109 = vset.pattern.permute.xlu0 2
  %110 = vperm.xlu0 %109, %v103
  %v111 = vpop.permute.xlu0 %110
  %112 = vset.pattern.permute.xlu0 2
  %113 = vperm.xlu0 %112, %v104
  %v114 = vpop.permute.xlu0 %113
  %115 = vset.pattern.permute.xlu0 2
  %116 = vperm.xlu0 %115, %v105
  %v117 = vpop.permute.xlu0 %116
  %vm118 = vcmp.eq.s32.totalorder %v18, %v108
  %vm119 = vcmp.eq.s32.totalorder %v19, %v108
  %vm120 = vcmp.eq.s32.totalorder %v20, %v108
  %vm121 = vcmp.eq.s32.totalorder %v21, %v108
  %vm122 = vcmp.eq.s32.totalorder %v18, %v111
  %vm123 = vcmp.eq.s32.totalorder %v19, %v111
  %vm124 = vcmp.eq.s32.totalorder %v20, %v111
  %vm125 = vcmp.eq.s32.totalorder %v21, %v111
  %vm126 = vcmp.eq.s32.totalorder %v18, %v114
  %vm127 = vcmp.eq.s32.totalorder %v19, %v114
  %vm128 = vcmp.eq.s32.totalorder %v20, %v114
  %vm129 = vcmp.eq.s32.totalorder %v21, %v114
  %vm130 = vcmp.eq.s32.totalorder %v18, %v117
  %vm131 = vcmp.eq.s32.totalorder %v19, %v117
  %vm132 = vcmp.eq.s32.totalorder %v20, %v117
  %vm133 = vcmp.eq.s32.totalorder %v21, %v117
  %vm134 = vmor %vm86, %vm118
  %vm135 = vmor %vm87, %vm119
  %vm136 = vmor %vm88, %vm120
  %vm137 = vmor %vm89, %vm121
  %vm138 = vmor %vm90, %vm122
  %vm139 = vmor %vm91, %vm123
  %vm140 = vmor %vm92, %vm124
  %vm141 = vmor %vm93, %vm125
  %vm142 = vmor %vm94, %vm126
  %vm143 = vmor %vm95, %vm127
  %vm144 = vmor %vm96, %vm128
  %vm145 = vmor %vm97, %vm129
  %vm146 = vmor %vm98, %vm130
  %vm147 = vmor %vm99, %vm131
  %vm148 = vmor %vm100, %vm132
  %vm149 = vmor %vm101, %vm133
  %v150 = vadd.s32 %v22, 150
  %v151 = vadd.s32 %v23, 150
  %v152 = vadd.s32 %v24, 150
  %v153 = vadd.s32 %v25, 150
  %154 = vset.pattern.permute.xlu0 3
  %155 = vperm.xlu0 %154, %v150
  %v156 = vpop.permute.xlu0 %155
  %157 = vset.pattern.permute.xlu0 3
  %158 = vperm.xlu0 %157, %v151
  %v159 = vpop.permute.xlu0 %158
  %160 = vset.pattern.permute.xlu0 3
  %161 = vperm.xlu0 %160, %v152
  %v162 = vpop.permute.xlu0 %161
  %163 = vset.pattern.permute.xlu0 3
  %164 = vperm.xlu0 %163, %v153
  %v165 = vpop.permute.xlu0 %164
  %vm166 = vcmp.eq.s32.totalorder %v18, %v156
  %vm167 = vcmp.eq.s32.totalorder %v19, %v156
  %vm168 = vcmp.eq.s32.totalorder %v20, %v156
  %vm169 = vcmp.eq.s32.totalorder %v21, %v156
  %vm170 = vcmp.eq.s32.totalorder %v18, %v159
  %vm171 = vcmp.eq.s32.totalorder %v19, %v159
  %vm172 = vcmp.eq.s32.totalorder %v20, %v159
  %vm173 = vcmp.eq.s32.totalorder %v21, %v159
  %vm174 = vcmp.eq.s32.totalorder %v18, %v162
  %vm175 = vcmp.eq.s32.totalorder %v19, %v162
  %vm176 = vcmp.eq.s32.totalorder %v20, %v162
  %vm177 = vcmp.eq.s32.totalorder %v21, %v162
  %vm178 = vcmp.eq.s32.totalorder %v18, %v165
  %vm179 = vcmp.eq.s32.totalorder %v19, %v165
  %vm180 = vcmp.eq.s32.totalorder %v20, %v165
  %vm181 = vcmp.eq.s32.totalorder %v21, %v165
  %vm182 = vmor %vm134, %vm166
  %vm183 = vmor %vm135, %vm167
  %vm184 = vmor %vm136, %vm168
  %vm185 = vmor %vm137, %vm169
  %vm186 = vmor %vm138, %vm170
  %vm187 = vmor %vm139, %vm171
  %vm188 = vmor %vm140, %vm172
  %vm189 = vmor %vm141, %vm173
  %vm190 = vmor %vm142, %vm174
  %vm191 = vmor %vm143, %vm175
  %vm192 = vmor %vm144, %vm176
  %vm193 = vmor %vm145, %vm177
  %vm194 = vmor %vm146, %vm178
  %vm195 = vmor %vm147, %vm179
  %vm196 = vmor %vm148, %vm180
  %vm197 = vmor %vm149, %vm181
  %v198 = vadd.s32 %v22, 200
  %v199 = vadd.s32 %v23, 200
  %v200 = vadd.s32 %v24, 200
  %v201 = vadd.s32 %v25, 200
  %202 = vset.pattern.permute.xlu0 4
  %203 = vperm.xlu0 %202, %v198
  %v204 = vpop.permute.xlu0 %203
  %205 = vset.pattern.permute.xlu0 4
  %206 = vperm.xlu0 %205, %v199
  %v207 = vpop.permute.xlu0 %206
  %208 = vset.pattern.permute.xlu0 4
  %209 = vperm.xlu0 %208, %v200
  %v210 = vpop.permute.xlu0 %209
  %211 = vset.pattern.permute.xlu0 4
  %212 = vperm.xlu0 %211, %v201
  %v213 = vpop.permute.xlu0 %212
  %vm214 = vcmp.eq.s32.totalorder %v18, %v204
  %vm215 = vcmp.eq.s32.totalorder %v19, %v204
  %vm216 = vcmp.eq.s32.totalorder %v20, %v204
  %vm217 = vcmp.eq.s32.totalorder %v21, %v204
  %vm218 = vcmp.eq.s32.totalorder %v18, %v207
  %vm219 = vcmp.eq.s32.totalorder %v19, %v207
  %vm220 = vcmp.eq.s32.totalorder %v20, %v207
  %vm221 = vcmp.eq.s32.totalorder %v21, %v207
  %vm222 = vcmp.eq.s32.totalorder %v18, %v210
  %vm223 = vcmp.eq.s32.totalorder %v19, %v210
  %vm224 = vcmp.eq.s32.totalorder %v20, %v210
  %vm225 = vcmp.eq.s32.totalorder %v21, %v210
  %vm226 = vcmp.eq.s32.totalorder %v18, %v213
  %vm227 = vcmp.eq.s32.totalorder %v19, %v213
  %vm228 = vcmp.eq.s32.totalorder %v20, %v213
  %vm229 = vcmp.eq.s32.totalorder %v21, %v213
  %vm230 = vmor %vm182, %vm214
  %vm231 = vmor %vm183, %vm215
  %vm232 = vmor %vm184, %vm216
  %vm233 = vmor %vm185, %vm217
  %vm234 = vmor %vm186, %vm218
  %vm235 = vmor %vm187, %vm219
  %vm236 = vmor %vm188, %vm220
  %vm237 = vmor %vm189, %vm221
  %vm238 = vmor %vm190, %vm222
  %vm239 = vmor %vm191, %vm223
  %vm240 = vmor %vm192, %vm224
  %vm241 = vmor %vm193, %vm225
  %vm242 = vmor %vm194, %vm226
  %vm243 = vmor %vm195, %vm227
  %vm244 = vmor %vm196, %vm228
  %vm245 = vmor %vm197, %vm229
  %v246 = vadd.s32 %v22, 250
  %v247 = vadd.s32 %v23, 250
  %v248 = vadd.s32 %v24, 250
  %v249 = vadd.s32 %v25, 250
  %250 = vset.pattern.permute.xlu0 5
  %251 = vperm.xlu0 %250, %v246
  %v252 = vpop.permute.xlu0 %251
  %253 = vset.pattern.permute.xlu0 5
  %254 = vperm.xlu0 %253, %v247
  %v255 = vpop.permute.xlu0 %254
  %256 = vset.pattern.permute.xlu0 5
  %257 = vperm.xlu0 %256, %v248
  %v258 = vpop.permute.xlu0 %257
  %259 = vset.pattern.permute.xlu0 5
  %260 = vperm.xlu0 %259, %v249
  %v261 = vpop.permute.xlu0 %260
  %vm262 = vcmp.eq.s32.totalorder %v18, %v252
  %vm263 = vcmp.eq.s32.totalorder %v19, %v252
  %vm264 = vcmp.eq.s32.totalorder %v20, %v252
  %vm265 = vcmp.eq.s32.totalorder %v21, %v252
  %vm266 = vcmp.eq.s32.totalorder %v18, %v255
  %vm267 = vcmp.eq.s32.totalorder %v19, %v255
  %vm268 = vcmp.eq.s32.totalorder %v20, %v255
  %vm269 = vcmp.eq.s32.totalorder %v21, %v255
  %vm270 = vcmp.eq.s32.totalorder %v18, %v258
  %vm271 = vcmp.eq.s32.totalorder %v19, %v258
  %vm272 = vcmp.eq.s32.totalorder %v20, %v258
  %vm273 = vcmp.eq.s32.totalorder %v21, %v258
  %vm274 = vcmp.eq.s32.totalorder %v18, %v261
  %vm275 = vcmp.eq.s32.totalorder %v19, %v261
  %vm276 = vcmp.eq.s32.totalorder %v20, %v261
  %vm277 = vcmp.eq.s32.totalorder %v21, %v261
  %vm278 = vmor %vm230, %vm262
  %vm279 = vmor %vm231, %vm263
  %vm280 = vmor %vm232, %vm264
  %vm281 = vmor %vm233, %vm265
  %vm282 = vmor %vm234, %vm266
  %vm283 = vmor %vm235, %vm267
  %vm284 = vmor %vm236, %vm268
  %vm285 = vmor %vm237, %vm269
  %vm286 = vmor %vm238, %vm270
  %vm287 = vmor %vm239, %vm271
  %vm288 = vmor %vm240, %vm272
  %vm289 = vmor %vm241, %vm273
  %vm290 = vmor %vm242, %vm274
  %vm291 = vmor %vm243, %vm275
  %vm292 = vmor %vm244, %vm276
  %vm293 = vmor %vm245, %vm277
  %v294 = vadd.s32 %v22, 300
  %v295 = vadd.s32 %v23, 300
  %v296 = vadd.s32 %v24, 300
  %v297 = vadd.s32 %v25, 300
  %298 = vset.pattern.permute.xlu0 6
  %299 = vperm.xlu0 %298, %v294
  %v300 = vpop.permute.xlu0 %299
  %301 = vset.pattern.permute.xlu0 6
  %302 = vperm.xlu0 %301, %v295
  %v303 = vpop.permute.xlu0 %302
  %304 = vset.pattern.permute.xlu0 6
  %305 = vperm.xlu0 %304, %v296
  %v306 = vpop.permute.xlu0 %305
  %307 = vset.pattern.permute.xlu0 6
  %308 = vperm.xlu0 %307, %v297
  %v309 = vpop.permute.xlu0 %308
  %vm310 = vcmp.eq.s32.totalorder %v18, %v300
  %vm311 = vcmp.eq.s32.totalorder %v19, %v300
  %vm312 = vcmp.eq.s32.totalorder %v20, %v300
  %vm313 = vcmp.eq.s32.totalorder %v21, %v300
  %vm314 = vcmp.eq.s32.totalorder %v18, %v303
  %vm315 = vcmp.eq.s32.totalorder %v19, %v303
  %vm316 = vcmp.eq.s32.totalorder %v20, %v303
  %vm317 = vcmp.eq.s32.totalorder %v21, %v303
  %vm318 = vcmp.eq.s32.totalorder %v18, %v306
  %vm319 = vcmp.eq.s32.totalorder %v19, %v306
  %vm320 = vcmp.eq.s32.totalorder %v20, %v306
  %vm321 = vcmp.eq.s32.totalorder %v21, %v306
  %vm322 = vcmp.eq.s32.totalorder %v18, %v309
  %vm323 = vcmp.eq.s32.totalorder %v19, %v309
  %vm324 = vcmp.eq.s32.totalorder %v20, %v309
  %vm325 = vcmp.eq.s32.totalorder %v21, %v309
  %vm326 = vmor %vm278, %vm310
  %vm327 = vmor %vm279, %vm311
  %vm328 = vmor %vm280, %vm312
  %vm329 = vmor %vm281, %vm313
  %vm330 = vmor %vm282, %vm314
  %vm331 = vmor %vm283, %vm315
  %vm332 = vmor %vm284, %vm316
  %vm333 = vmor %vm285, %vm317
  %vm334 = vmor %vm286, %vm318
  %vm335 = vmor %vm287, %vm319
  %vm336 = vmor %vm288, %vm320
  %vm337 = vmor %vm289, %vm321
  %vm338 = vmor %vm290, %vm322
  %vm339 = vmor %vm291, %vm323
  %vm340 = vmor %vm292, %vm324
  %vm341 = vmor %vm293, %vm325
  %v342 = vadd.s32 %v22, 350
  %v343 = vadd.s32 %v23, 350
  %v344 = vadd.s32 %v24, 350
  %v345 = vadd.s32 %v25, 350
  %346 = vset.pattern.permute.xlu0 7
  %347 = vperm.xlu0 %346, %v342
  %v348 = vpop.permute.xlu0 %347
  %349 = vset.pattern.permute.xlu0 7
  %350 = vperm.xlu0 %349, %v343
  %v351 = vpop.permute.xlu0 %350
  %352 = vset.pattern.permute.xlu0 7
  %353 = vperm.xlu0 %352, %v344
  %v354 = vpop.permute.xlu0 %353
  %355 = vset.pattern.permute.xlu0 7
  %356 = vperm.xlu0 %355, %v345
  %v357 = vpop.permute.xlu0 %356
  %vm358 = vcmp.eq.s32.totalorder %v18, %v348
  %vm359 = vcmp.eq.s32.totalorder %v19, %v348
  %vm360 = vcmp.eq.s32.totalorder %v20, %v348
  %vm361 = vcmp.eq.s32.totalorder %v21, %v348
  %vm362 = vcmp.eq.s32.totalorder %v18, %v351
  %vm363 = vcmp.eq.s32.totalorder %v19, %v351
  %vm364 = vcmp.eq.s32.totalorder %v20, %v351
  %vm365 = vcmp.eq.s32.totalorder %v21, %v351
  %vm366 = vcmp.eq.s32.totalorder %v18, %v354
  %vm367 = vcmp.eq.s32.totalorder %v19, %v354
  %vm368 = vcmp.eq.s32.totalorder %v20, %v354
  %vm369 = vcmp.eq.s32.totalorder %v21, %v354
  %vm370 = vcmp.eq.s32.totalorder %v18, %v357
  %vm371 = vcmp.eq.s32.totalorder %v19, %v357
  %vm372 = vcmp.eq.s32.totalorder %v20, %v357
  %vm373 = vcmp.eq.s32.totalorder %v21, %v357
  %vm374 = vmor %vm326, %vm358
  %vm375 = vmor %vm327, %vm359
  %vm376 = vmor %vm328, %vm360
  %vm377 = vmor %vm329, %vm361
  %vm378 = vmor %vm330, %vm362
  %vm379 = vmor %vm331, %vm363
  %vm380 = vmor %vm332, %vm364
  %vm381 = vmor %vm333, %vm365
  %vm382 = vmor %vm334, %vm366
  %vm383 = vmor %vm335, %vm367
  %vm384 = vmor %vm336, %vm368
  %vm385 = vmor %vm337, %vm369
  %vm386 = vmor %vm338, %vm370
  %vm387 = vmor %vm339, %vm371
  %vm388 = vmor %vm340, %vm372
  %vm389 = vmor %vm341, %vm373
  %v390 = vsel %vm374, 1, 0
  %v391 = vsel %vm375, 1, 0
  %v392 = vsel %vm376, 1, 0
  %v393 = vsel %vm377, 1, 0
  %v394 = vsel %vm378, 1, 0
  %v395 = vsel %vm379, 1, 0
  %v396 = vsel %vm380, 1, 0
  %v397 = vsel %vm381, 1, 0
  %v398 = vsel %vm382, 1, 0
  %v399 = vsel %vm383, 1, 0
  %v400 = vsel %vm384, 1, 0
  %v401 = vsel %vm385, 1, 0
  %v402 = vsel %vm386, 1, 0
  %v403 = vsel %vm387, 1, 0
  %v404 = vsel %vm388, 1, 0
  %v405 = vsel %vm389, 1, 0
  %v406 = vcvt.s32.f32 %v390
  %v407 = vcvt.s32.f32 %v391
  %v408 = vcvt.s32.f32 %v392
  %v409 = vcvt.s32.f32 %v393
  %v410 = vcvt.s32.f32 %v394
  %v411 = vcvt.s32.f32 %v395
  %v412 = vcvt.s32.f32 %v396
  %v413 = vcvt.s32.f32 %v397
  %v414 = vcvt.s32.f32 %v398
  %v415 = vcvt.s32.f32 %v399
  %v416 = vcvt.s32.f32 %v400
  %v417 = vcvt.s32.f32 %v401
  %v418 = vcvt.s32.f32 %v402
  %v419 = vcvt.s32.f32 %v403
  %v420 = vcvt.s32.f32 %v404
  %v421 = vcvt.s32.f32 %v405
  %v422 = vld [vmem:[%s1] sm:$0xff]
  %v423 = vld [vmem:[%s1 + $0x8] sm:$0xff]
  %v424 = vld [vmem:[%s1 + $0x10] sm:$0xff]
  %v425 = vld [vmem:[%s1 + $0x18] sm:$0xff]
  %v426 = vld [vmem:[%s1 + $0x20] sm:$0xff]
  %v427 = vld [vmem:[%s1 + $0x28] sm:$0xff]
  %v428 = vld [vmem:[%s1 + $0x30] sm:$0xff]
  %v429 = vld [vmem:[%s1 + $0x38] sm:$0xff]
  %v430 = vld [vmem:[%s1 + $0x40] sm:$0xff]
  %v431 = vld [vmem:[%s1 + $0x48] sm:$0xff]
  %v432 = vld [vmem:[%s1 + $0x50] sm:$0xff]
  %v433 = vld [vmem:[%s1 + $0x58] sm:$0xff]
  %v434 = vld [vmem:[%s1 + $0x60] sm:$0xff]
  %v435 = vld [vmem:[%s1 + $0x68] sm:$0xff]
  %v436 = vld [vmem:[%s1 + $0x70] sm:$0xff]
  %v437 = vld [vmem:[%s1 + $0x78] sm:$0xff]
  %v438 = vld [vmem:[%s1 + $0x80] sm:$0xff]
  %v439 = vld [vmem:[%s1 + $0x88] sm:$0xff]
  %v440 = vld [vmem:[%s1 + $0x90] sm:$0xff]
  %v441 = vld [vmem:[%s1 + $0x98] sm:$0xff]
  %v442 = vld [vmem:[%s1 + $0xa0] sm:$0xff]
  %v443 = vld [vmem:[%s1 + $0xa8] sm:$0xff]
  %v444 = vld [vmem:[%s1 + $0xb0] sm:$0xff]
  %v445 = vld [vmem:[%s1 + $0xb8] sm:$0xff]
  %v446 = vld [vmem:[%s1 + $0xc0] sm:$0xff]
  %v447 = vld [vmem:[%s1 + $0xc8] sm:$0xff]
  %v448 = vld [vmem:[%s1 + $0xd0] sm:$0xff]
  %v449 = vld [vmem:[%s1 + $0xd8] sm:$0xff]
  %v450 = vld [vmem:[%s1 + $0xe0] sm:$0xff]
  %v451 = vld [vmem:[%s1 + $0xe8] sm:$0xff]
  %v452 = vld [vmem:[%s1 + $0xf0] sm:$0xff]
  %v453 = vld [vmem:[%s1 + $0xf8] sm:$0xff]
  %v454 = vld [vmem:[%s1 + $0x100] sm:$0xff]
  %v455 = vld [vmem:[%s1 + $0x108] sm:$0xff]
  %v456 = vld [vmem:[%s1 + $0x110] sm:$0xff]
  %v457 = vld [vmem:[%s1 + $0x118] sm:$0xff]
  %v458 = vld [vmem:[%s1 + $0x120] sm:$0xff]
  %v459 = vld [vmem:[%s1 + $0x128] sm:$0xff]
  %v460 = vld [vmem:[%s1 + $0x130] sm:$0xff]
  %v461 = vld [vmem:[%s1 + $0x138] sm:$0xff]
  %v462 = vld [vmem:[%s1 + $0x140] sm:$0xff]
  %v463 = vld [vmem:[%s1 + $0x148] sm:$0xff]
  %v464 = vld [vmem:[%s1 + $0x150] sm:$0xff]
  %v465 = vld [vmem:[%s1 + $0x158] sm:$0xff]
  %v466 = vld [vmem:[%s1 + $0x160] sm:$0xff]
  %v467 = vld [vmem:[%s1 + $0x168] sm:$0xff]
  %v468 = vld [vmem:[%s1 + $0x170] sm:$0xff]
  %v469 = vld [vmem:[%s1 + $0x178] sm:$0xff]
  %v470 = vld [vmem:[%s1 + $0x180] sm:$0xff]
  %v471 = vld [vmem:[%s1 + $0x188] sm:$0xff]
  %v472 = vld [vmem:[%s3] sm:$0x1]
  %v473 = vperm.slane %v472, 0
  %vm474 = vcmask 130048
  %v476 = vsel %vm474, %v409, 0
  %v479 = vsel %vm474, %v413, 0
  %v482 = vsel %vm474, %v417, 0
  %v485 = vsel %vm474, %v421, 0
  %487 = vmatpush.msra.mxu0 %v437
  %488 = vmatpush.msra.mxu0 %v436
  %489 = vmatpush.msra.mxu0 %v435
  %490 = vmatpush.msra.mxu0 %v434
  %491 = vmatpush.msra.mxu0 %v433
  %492 = vmatpush.msra.mxu0 %v432
  %493 = vmatpush.msra.mxu0 %v431
  %494 = vmatpush.msra.mxu0 %v430
  %495 = vmatpush.msra.mxu0 %v429
  %496 = vmatpush.msra.mxu0 %v428
  %497 = vmatpush.msra.mxu0 %v427
  %498 = vmatpush.msra.mxu0 %v426
  %499 = vmatpush.msra.mxu0 %v425
  %500 = vmatpush.msra.mxu0 %v424
  %501 = vmatpush.msra.mxu0 %v423
  %502 = vmatpush.msra.mxu0 %v422
  %503 = vmatmul.f32.gmra.mxu0 %v406
  %v504 = vpop.f32.mrf.mxu0
  %v505 = vadd.f32 %v473, %v504
  %506 = vmatmul.f32.gmra.mxu0 %v410
  %v507 = vpop.f32.mrf.mxu0
  %v508 = vadd.f32 %v473, %v507
  %509 = vmatmul.f32.gmra.mxu0 %v414
  %v510 = vpop.f32.mrf.mxu0
  %v511 = vadd.f32 %v473, %v510
  %512 = vmatmul.f32.gmra.mxu0 %v418
  %v513 = vpop.f32.mrf.mxu0
  %v514 = vadd.f32 %v473, %v513
  %515 = vdwg.mxu0
  %516 = vmatpush.msra.mxu0 %v453
  %517 = vmatpush.msra.mxu0 %v452
  %518 = vmatpush.msra.mxu0 %v451
  %519 = vmatpush.msra.mxu0 %v450
  %520 = vmatpush.msra.mxu0 %v449
  %521 = vmatpush.msra.mxu0 %v448
  %522 = vmatpush.msra.mxu0 %v447
  %523 = vmatpush.msra.mxu0 %v446
  %524 = vmatpush.msra.mxu0 %v445
  %525 = vmatpush.msra.mxu0 %v444
  %526 = vmatpush.msra.mxu0 %v443
  %527 = vmatpush.msra.mxu0 %v442
  %528 = vmatpush.msra.mxu0 %v441
  %529 = vmatpush.msra.mxu0 %v440
  %530 = vmatpush.msra.mxu0 %v439
  %531 = vmatpush.msra.mxu0 %v438
  %532 = vmatmul.f32.gmra.mxu0 %v407
  %v533 = vpop.f32.mrf.mxu0
  %v534 = vadd.f32 %v505, %v533
  %535 = vmatmul.f32.gmra.mxu0 %v411
  %v536 = vpop.f32.mrf.mxu0
  %v537 = vadd.f32 %v508, %v536
  %538 = vmatmul.f32.gmra.mxu0 %v415
  %v539 = vpop.f32.mrf.mxu0
  %v540 = vadd.f32 %v511, %v539
  %541 = vmatmul.f32.gmra.mxu0 %v419
  %v542 = vpop.f32.mrf.mxu0
  %v543 = vadd.f32 %v514, %v542
  %544 = vdwg.mxu0
  %545 = vmatpush.msra.mxu0 %v469
  %546 = vmatpush.msra.mxu0 %v468
  %547 = vmatpush.msra.mxu0 %v467
  %548 = vmatpush.msra.mxu0 %v466
  %549 = vmatpush.msra.mxu0 %v465
  %550 = vmatpush.msra.mxu0 %v464
  %551 = vmatpush.msra.mxu0 %v463
  %552 = vmatpush.msra.mxu0 %v462
  %553 = vmatpush.msra.mxu0 %v461
  %554 = vmatpush.msra.mxu0 %v460
  %555 = vmatpush.msra.mxu0 %v459
  %556 = vmatpush.msra.mxu0 %v458
  %557 = vmatpush.msra.mxu0 %v457
  %558 = vmatpush.msra.mxu0 %v456
  %559 = vmatpush.msra.mxu0 %v455
  %560 = vmatpush.msra.mxu0 %v454
  %561 = vmatmul.f32.gmra.mxu0 %v408
  %v562 = vpop.f32.mrf.mxu0
  %v563 = vadd.f32 %v534, %v562
  %564 = vmatmul.f32.gmra.mxu0 %v412
  %v565 = vpop.f32.mrf.mxu0
  %v566 = vadd.f32 %v537, %v565
  %567 = vmatmul.f32.gmra.mxu0 %v416
  %v568 = vpop.f32.mrf.mxu0
  %v569 = vadd.f32 %v540, %v568
  %570 = vmatmul.f32.gmra.mxu0 %v420
  %v571 = vpop.f32.mrf.mxu0
  %v572 = vadd.f32 %v543, %v571
  %573 = vdwg.mxu0
  %574 = vmatpush.msra.mxu0 0.0
  %575 = vmatpush.msra.mxu0 0.0
  %576 = vmatpush.msra.mxu0 0.0
  %577 = vmatpush.msra.mxu0 0.0
  %578 = vmatpush.msra.mxu0 0.0
  %579 = vmatpush.msra.mxu0 0.0
  %580 = vmatpush.msra.mxu0 0.0
  %581 = vmatpush.msra.mxu0 0.0
  %582 = vmatpush.msra.mxu0 0.0
  %583 = vmatpush.msra.mxu0 0.0
  %584 = vmatpush.msra.mxu0 0.0
  %585 = vmatpush.msra.mxu0 0.0
  %586 = vmatpush.msra.mxu0 0.0
  %587 = vmatpush.msra.mxu0 0.0
  %588 = vmatpush.msra.mxu0 %v471
  %589 = vmatpush.msra.mxu0 %v470
  %590 = vmatmul.f32.gmra.mxu0 %v476
  %v591 = vpop.f32.mrf.mxu0
  %v592 = vadd.f32 %v563, %v591
  %593 = vmatmul.f32.gmra.mxu0 %v479
  %v594 = vpop.f32.mrf.mxu0
  %v595 = vadd.f32 %v566, %v594
  %596 = vmatmul.f32.gmra.mxu0 %v482
  %v597 = vpop.f32.mrf.mxu0
  %v598 = vadd.f32 %v569, %v597
  %599 = vmatmul.f32.gmra.mxu0 %v485
  %v600 = vpop.f32.mrf.mxu0
  %v601 = vadd.f32 %v572, %v600
  %602 = vdwg.mxu0
  %v603 = vmax.f32 %v592, 0.0
  %v604 = vmax.f32 %v595, 0.0
  %v605 = vmax.f32 %v598, 0.0
  %v606 = vmax.f32 %v601, 0.0
  %611 = vrot.lane.b32.xlu0 %v603, 64
  %v612 = vpop.permute.xlu0 %611
  %613 = vrot.lane.b32.xlu0 %v604, 64
  %v614 = vpop.permute.xlu0 %613
  %615 = vrot.lane.b32.xlu0 %v605, 64
  %v616 = vpop.permute.xlu0 %615
  %617 = vrot.lane.b32.xlu0 %v606, 64
  %v618 = vpop.permute.xlu0 %617
  %v623 = vmax.f32 %v603, %v612
  %v624 = vmax.f32 %v604, %v614
  %v625 = vmax.f32 %v605, %v616
  %v626 = vmax.f32 %v606, %v618
  %v627 = vld [vmem:[%s2] sm:$0xff]
  %v628 = vld [vmem:[%s2 + $0x8] sm:$0xff]
  %v629 = vld [vmem:[%s2 + $0x10] sm:$0xff]
  %v630 = vld [vmem:[%s2 + $0x18] sm:$0xff]
  %v631 = vld [vmem:[%s2 + $0x20] sm:$0xff]
  %v632 = vld [vmem:[%s2 + $0x28] sm:$0xff]
  %v633 = vld [vmem:[%s2 + $0x30] sm:$0xff]
  %v634 = vld [vmem:[%s2 + $0x38] sm:$0xff]
  %v635 = vld [vmem:[%s3 + $0x1] sm:$0x1]
  %v636 = vperm.slane %v635, 0
  %vm637 = vcmask 523264
  %v639 = vsel %vm637, %v623, 0
  %v642 = vsel %vm637, %v624, 0
  %v645 = vsel %vm637, %v625, 0
  %v648 = vsel %vm637, %v626, 0
  %650 = vmatpush.msra.mxu0 0.0
  %651 = vmatpush.msra.mxu0 0.0
  %652 = vmatpush.msra.mxu0 0.0
  %653 = vmatpush.msra.mxu0 0.0
  %654 = vmatpush.msra.mxu0 0.0
  %655 = vmatpush.msra.mxu0 0.0
  %656 = vmatpush.msra.mxu0 0.0
  %657 = vmatpush.msra.mxu0 0.0
  %658 = vmatpush.msra.mxu0 %v634
  %659 = vmatpush.msra.mxu0 %v633
  %660 = vmatpush.msra.mxu0 %v632
  %661 = vmatpush.msra.mxu0 %v631
  %662 = vmatpush.msra.mxu0 %v630
  %663 = vmatpush.msra.mxu0 %v629
  %664 = vmatpush.msra.mxu0 %v628
  %665 = vmatpush.msra.mxu0 %v627
  %666 = vmatmul.f32.gmra.mxu0 %v639
  %v667 = vpop.f32.mrf.mxu0
  %v668 = vadd.f32 %v636, %v667
  %669 = vmatmul.f32.gmra.mxu0 %v642
  %v670 = vpop.f32.mrf.mxu0
  %v671 = vadd.f32 %v636, %v670
  %672 = vmatmul.f32.gmra.mxu0 %v645
  %v673 = vpop.f32.mrf.mxu0
  %v674 = vadd.f32 %v636, %v673
  %675 = vmatmul.f32.gmra.mxu0 %v648
  %v676 = vpop.f32.mrf.mxu0
  %v677 = vadd.f32 %v636, %v676
  %678 = vdwg.mxu0
  %vm679 = vcmp.eq.s32.totalorder %v18, 16
  %v680 = vsub.f32 0.0, %v668
  %v681 = vsub.f32 0.0, %v671
  %v682 = vsub.f32 0.0, %v674
  %v683 = vsub.f32 0.0, %v677
  %v684 = vmul.f32 %v680, 1.442695
  %v685 = vpow.pop %v684
  %v686 = vmul.f32 %v681, 1.442695
  %v687 = vpow.pop %v686
  %v688 = vmul.f32 %v682, 1.442695
  %v689 = vpow.pop %v688
  %v690 = vmul.f32 %v683, 1.442695
  %v691 = vpow.pop %v690
  %v692 = vadd.f32 %v685, 1.0
  %v693 = vadd.f32 %v687, 1.0
  %v694 = vadd.f32 %v689, 1.0
  %v695 = vadd.f32 %v691, 1.0
  %v696 = vrcp.pop %v692
  %v697 = vmul.f32 %v692, %v696
  %v698 = vsub.f32 1.0, %v697
  %v699 = vmul.f32 %v696, %v698
  %v700 = vadd.f32 %v696, %v699
  %vm701 = vweird.f32 %v692
  %vm702 = vweird.f32 %v696
  %vm703 = vmor %vm701, %vm702
  %v704 = vsel %vm703, %v696, %v700
  %v705 = vand.u32 2147483647, %v692
  %vm706 = vcmp.eq.f32.partialorder %v705, 8.507059e+37
  %v707 = vand.u32 %v692, 2147483648
  %v708 = vor.u32 1.1754944e-38, %v707
  %v709 = vsel %vm706, %v708, %v704
  %v710 = vmul.f32 1.0, %v709
  %v711 = vrcp.pop %v693
  %v712 = vmul.f32 %v693, %v711
  %v713 = vsub.f32 1.0, %v712
  %v714 = vmul.f32 %v711, %v713
  %v715 = vadd.f32 %v711, %v714
  %vm716 = vweird.f32 %v693
  %vm717 = vweird.f32 %v711
  %vm718 = vmor %vm716, %vm717
  %v719 = vsel %vm718, %v711, %v715
  %v720 = vand.u32 2147483647, %v693
  %vm721 = vcmp.eq.f32.partialorder %v720, 8.507059e+37
  %v722 = vand.u32 %v693, 2147483648
  %v723 = vor.u32 1.1754944e-38, %v722
  %v724 = vsel %vm721, %v723, %v719
  %v725 = vmul.f32 1.0, %v724
  %v726 = vrcp.pop %v694
  %v727 = vmul.f32 %v694, %v726
  %v728 = vsub.f32 1.0, %v727
  %v729 = vmul.f32 %v726, %v728
  %v730 = vadd.f32 %v726, %v729
  %vm731 = vweird.f32 %v694
  %vm732 = vweird.f32 %v726
  %vm733 = vmor %vm731, %vm732
  %v734 = vsel %vm733, %v726, %v730
  %v735 = vand.u32 2147483647, %v694
  %vm736 = vcmp.eq.f32.partialorder %v735, 8.507059e+37
  %v737 = vand.u32 %v694, 2147483648
  %v738 = vor.u32 1.1754944e-38, %v737
  %v739 = vsel %vm736, %v738, %v734
  %v740 = vmul.f32 1.0, %v739
  %v741 = vrcp.pop %v695
  %v742 = vmul.f32 %v695, %v741
  %v743 = vsub.f32 1.0, %v742
  %v744 = vmul.f32 %v741, %v743
  %v745 = vadd.f32 %v741, %v744
  %vm746 = vweird.f32 %v695
  %vm747 = vweird.f32 %v741
  %vm748 = vmor %vm746, %vm747
  %v749 = vsel %vm748, %v741, %v745
  %v750 = vand.u32 2147483647, %v695
  %vm751 = vcmp.eq.f32.partialorder %v750, 8.507059e+37
  %v752 = vand.u32 %v695, 2147483648
  %v753 = vor.u32 1.1754944e-38, %v752
  %v754 = vsel %vm751, %v753, %v749
  %v755 = vmul.f32 1.0, %v754
  %v756 = vsel %vm679, %v710, %v668
  %v757 = vsel %vm679, %v725, %v671
  %v758 = vsel %vm679, %v740, %v674
  %v759 = vsel %vm679, %v755, %v677
  %760 = vst [vmem:[%s4] sm:$0xff] 0.0
  %vm761 = vcmask 138240
  %762 = vst.msk [vmem:[%s4] sm:$0xff] %vm761, %v756
  %764 = vrot.lane.b32.xlu0 %v757, 32
  %v765 = vpop.permute.xlu0 %764
  %vm767 = vcmask 400640
  %768 = vst.msk [vmem:[%s4] sm:$0xff] %vm767, %v765
  %770 = vrot.lane.b32.xlu0 %v758, 64
  %v771 = vpop.permute.xlu0 %770
  %vm773 = vcmask 663040
  %774 = vst.msk [vmem:[%s4] sm:$0xff] %vm773, %v771
  %776 = vrot.lane.b32.xlu0 %v759, 96
  %v777 = vpop.permute.xlu0 %776
  %vm779 = vcmask 925440
  %780 = vst.msk [vmem:[%s4] sm:$0xff] %vm779, %v777
  // Predicated region
  $region18: #{cnn_forward.1} parent=0 // pred_check
    _
  $region19: #{cnn_forward.1} parent=0 // pred_check_branch
    %782 = sbr.rel (0) target = $region21
  $region20: #{cnn_forward.1} parent=0 // pred_region
    _
  $region21: #{cnn_forward.1} parent=0 // pred_fallthru
    _
  // Predicated region
  $region22: #{cnn_forward.1} parent=0 // pred_check
    _
  $region23: #{cnn_forward.1} parent=0 // pred_check_branch
    %784 = sbr.rel (0) target = $region25
  $region24: #{cnn_forward.1} parent=0 // pred_region
    _
  $region25: #{cnn_forward.1} parent=0 // pred_fallthru
    _

</llo_original>
